<compile_context>
chip_gen: v5e
topology: v5e:2x2
jax: 0.10.0
libtpu: 0.0.40
codegen_flags: <defaults>
</compile_context>

<pallas_src>
import functools

import jax
import jax.numpy as jnp
from jax.experimental import pallas as pl
from jax.experimental.pallas import tpu as pltpu


def _bert_embedding_kernel(seq_ids_ref,                               # scalar prefetch (SMEM)
                           tok_hbm, segtab_ref, seg_ref, pe_ref, *rest,
                           use_dropout: bool, drop_p: float,
                           seq_len: int, tile_s: int, vocab: int):
    if use_dropout:
        rand_ref, out_ref, gbuf, sems = rest
    else:
        out_ref, gbuf, sems = rest

    b = pl.program_id(0)
    s = pl.program_id(1)
    base = b * seq_len + s * tile_s

    # ---- token embedding: DMA row-gather from HBM into VMEM scratch ----
    @pl.loop(0, tile_s)
    def _start(i):
        tok = jnp.clip(seq_ids_ref[base + i], 0, vocab - 1)   # guard OOB ids (torch would raise)
        pltpu.make_async_copy(tok_hbm.at[tok], gbuf.at[i], sems.at[i]).start()

    # ---- segment embedding: 3-way select on the VPU (overlaps with the gather DMAs) ----
    tab = segtab_ref[...]                                     # (3, D)
    seg = seg_ref[0]                                          # (TILE_S, 1) int32
    seg_emb = jnp.where(seg == 1, tab[1:2, :],
                        jnp.where(seg == 2, tab[2:3, :], tab[0:1, :]))

    # ---- wait for all gathered token rows ----
    @pl.loop(0, tile_s)
    def _wait(i):
        pltpu.make_async_copy(tok_hbm.at[0], gbuf.at[i], sems.at[i]).wait()

    x = gbuf[...] + seg_emb + pe_ref[...]

    if use_dropout:
        keep_prob = 1.0 - drop_p
        keep = rand_ref[0] < keep_prob                        # uniform [0,1) < keep_prob
        x = jnp.where(keep, x * (1.0 / keep_prob), 0.0)
    # TODO(synk): dropout mask is generated with jax.random in the wrapper; semantics match
    #             torch (Bernoulli keep + 1/(1-p) scale) but the RNG bit stream differs.

    out_ref[0] = x.astype(out_ref.dtype)


def make_positional_encoding(max_len: int, d_model: int) -> jnp.ndarray:
    """Replicates PositionalEmbedding.__init__ exactly (including its exponent convention)."""
    pos = jnp.arange(max_len, dtype=jnp.float32)[:, None]           # (L, 1)
    i_even = jnp.arange(0, d_model, 2, dtype=jnp.float32)           # (D/2,)
    denom_sin = jnp.power(10000.0, 2.0 * i_even / d_model)          # for pe[:, i]
    denom_cos = jnp.power(10000.0, 2.0 * (i_even + 1.0) / d_model)  # for pe[:, i+1]
    pe = jnp.zeros((max_len, d_model), dtype=jnp.float32)
    pe = pe.at[:, 0::2].set(jnp.sin(pos / denom_sin))
    pe = pe.at[:, 1::2].set(jnp.cos(pos / denom_cos))
    return pe


def _choose_seq_tile(seq_len: int) -> int:
    # Cap at 256 so the per-row DMA semaphore array and gather scratch stay small.
    for t in (256, 128, 64, 32, 16, 8):
        if seq_len % t == 0:
            return t
    return seq_len


def bert_embedding(sequence, segment_label, tok_table, seg_table, pe,
                   *, train: bool = False, drop_p: float = 0.1, seed: int = 0):
    """sequence, segment_label: (B, S) int32; returns (B, S, D) float32."""
    B, S = sequence.shape
    V, D = tok_table.shape
    tile_s = _choose_seq_tile(S)
    n_tiles = S // tile_s
    use_dropout = bool(train) and float(drop_p) > 0.0

    seq_flat = sequence.reshape(-1).astype(jnp.int32)            # (B*S,) -> SMEM scalar prefetch
    seg_in = segment_label.reshape(B, S, 1).astype(jnp.int32)    # tiny per-tile block

    kernel = functools.partial(_bert_embedding_kernel, use_dropout=use_dropout,
                               drop_p=float(drop_p), seq_len=S, tile_s=tile_s, vocab=V)

    in_specs = [
        pl.BlockSpec(memory_space=pl.ANY),                           # token table stays in HBM
        pl.BlockSpec((3, D), lambda b, s, ids: (0, 0)),              # segment table -> VMEM
        pl.BlockSpec((1, tile_s, 1), lambda b, s, ids: (b, s, 0)),   # segment ids tile
        pl.BlockSpec((tile_s, D), lambda b, s, ids: (s, 0)),         # PE reused across batch
    ]
    inputs = [seq_flat, tok_table, seg_table, seg_in, pe]

    if use_dropout:
        rand = jax.random.uniform(jax.random.PRNGKey(seed), (B, S, D), dtype=jnp.float32)
        in_specs.append(pl.BlockSpec((1, tile_s, D), lambda b, s, ids: (b, s, 0)))
        inputs.append(rand)

    grid_spec = pltpu.PrefetchScalarGridSpec(
        num_scalar_prefetch=1,
        grid=(B, n_tiles),
        in_specs=in_specs,
        out_specs=pl.BlockSpec((1, tile_s, D), lambda b, s, ids: (b, s, 0)),
        scratch_shapes=[
            pltpu.VMEM((tile_s, D), tok_table.dtype),    # gathered token rows
            pltpu.SemaphoreType.DMA((tile_s,)),          # one DMA sem per gathered row
        ],
    )

    out = pl.pallas_call(
        kernel,
        out_shape=jax.ShapeDtypeStruct((B, S, D), jnp.float32),
        grid_spec=grid_spec,
        compiler_params=pltpu.CompilerParams(
            dimension_semantics=("parallel", "parallel")),           # both TCs take tiles
    )(*inputs)

    return out


if __name__ == "__main__":
    # Small shapes consistent with the module: seq_len == PositionalEmbedding max_len.
    vocab_size = 32
    embed_size = 32
    seq_len = 8
    batch = 2

    key = jax.random.PRNGKey(0)
    k_tok, k_seg, k_ids, k_lbl = jax.random.split(key, 4)

    # Deterministic parameter init (nn.Embedding ~ N(0,1); padding_idx=0 row zeroed).
    tok_table = jax.random.normal(k_tok, (vocab_size, embed_size), dtype=jnp.float32)
    tok_table = tok_table.at[0].set(0.0)
    seg_table = jax.random.normal(k_seg, (3, embed_size), dtype=jnp.float32)
    seg_table = seg_table.at[0].set(0.0)
    pe = make_positional_encoding(seq_len, embed_size)

    sequence = jax.random.randint(k_ids, (batch, seq_len), 0, vocab_size, dtype=jnp.int32)
    segment_label = jax.random.randint(k_lbl, (batch, seq_len), 0, 3, dtype=jnp.int32)

    # Eval mode (dropout = identity), matching module.eval() semantics.
    out = bert_embedding(sequence, segment_label, tok_table, seg_table, pe,
                         train=False, drop_p=0.1)
    out = jax.block_until_ready(out)

    # Pure-JAX reference (token gather + pe + segment gather).
    ref = (jnp.take(tok_table, sequence, axis=0)
           + pe[None, :, :]
           + jnp.take(seg_table, segment_label, axis=0))
    assert out.shape == (batch, seq_len, embed_size)
    assert jnp.allclose(out, ref, atol=1e-5, rtol=1e-5), "eval-mode mismatch vs reference"

    # Train mode: mask is deterministic given the seed, so check exactly.
    drop_p = 0.5
    seed = 123
    out_tr = jax.block_until_ready(
        bert_embedding(sequence, segment_label, tok_table, seg_table, pe,
                       train=True, drop_p=drop_p, seed=seed))
    keep_prob = 1.0 - drop_p
    rand = jax.random.uniform(jax.random.PRNGKey(seed),
                              (batch, seq_len, embed_size), dtype=jnp.float32)
    ref_tr = jnp.where(rand < keep_prob, ref / keep_prob, 0.0)
    assert jnp.allclose(out_tr, ref_tr, atol=1e-5, rtol=1e-5), "train-mode dropout mismatch"

    print("KERNEL_OK")
</pallas_src>

<mosaic_0001>
module attributes {stable_mosaic.version = 11 : i64} {
  func.func @_bert_embedding_kernel(%arg0: i32, %arg1: i32, %arg2: memref<16xi32, #tpu.memory_space<smem>>, %arg3: memref<32x32xf32, #tpu.memory_space<any>>, %arg4: memref<3x32xf32, #tpu.memory_space<vmem>>, %arg5: memref<1x8x1xi32, #tpu.memory_space<vmem>>, %arg6: memref<8x32xf32, #tpu.memory_space<vmem>>, %arg7: memref<1x8x32xf32, #tpu.memory_space<vmem>>, %arg8: memref<8x32xf32, #tpu.memory_space<vmem>>, %arg9: memref<8x!tpu.dma_semaphore, #tpu.memory_space<semaphore_mem>>) attributes {dimension_semantics = [#tpu.dimension_semantics<parallel>, #tpu.dimension_semantics<parallel>], iteration_bounds = array<i64: 2, 1>, scalar_prefetch = 1 : i64, scratch_operands = 2 : i64, tpu.core_type = #tpu.core_type<tc>, window_params = [{}, {pipeline_mode = #tpu.pipeline_mode<synchronous>, transform_indices = @transform_1, window_bounds = array<i64: 3, 32>}, {transform_indices = @transform_2, window_bounds = array<i64: 1, 8, 1>}, {transform_indices = @transform_3, window_bounds = array<i64: 8, 32>}, {transform_indices = @transform_4, window_bounds = array<i64: 1, 8, 32>}]} {
    %c8_i32 = arith.constant 8 : i32
    %0 = arith.muli %arg0, %c8_i32 : i32
    %c8_i32_0 = arith.constant 8 : i32
    %1 = arith.muli %arg1, %c8_i32_0 : i32
    %2 = arith.addi %0, %1 : i32
    %c0_i32 = arith.constant 0 : i32
    %c8_i32_1 = arith.constant 8 : i32
    %3 = arith.addi %c0_i32, %c8_i32_1 : i32
    %c1_i32 = arith.constant 1 : i32
    scf.for %arg10 = %c0_i32 to %3 step %c1_i32  : i32 {
      %c1_i32_19 = arith.constant 1 : i32
      %34 = arith.muli %arg10, %c1_i32_19 : i32
      %c0_i32_20 = arith.constant 0 : i32
      %35 = arith.addi %c0_i32_20, %34 : i32
      %36 = arith.addi %2, %35 : i32
      %37 = arith.index_cast %36 : i32 to index
      %38 = memref.load %arg2[%37] : memref<16xi32, #tpu.memory_space<smem>>
      %c0_i32_21 = arith.constant 0 : i32
      %c31_i32 = arith.constant 31 : i32
      %39 = arith.maxsi %c0_i32_21, %38 : i32
      %40 = arith.minsi %c31_i32, %39 : i32
      %c0_i32_22 = arith.constant 0 : i32
      %41 = tpu.memref_slice %arg3[%40, %c0_i32_22] : memref<32x32xf32, #tpu.memory_space<any>> -> memref<1x32xf32, #tpu.memory_space<any>>
      %42 = tpu.memref_squeeze %41 : memref<1x32xf32, #tpu.memory_space<any>> -> memref<32xf32, #tpu.memory_space<any>>
      %c0_i32_23 = arith.constant 0 : i32
      %43 = tpu.memref_slice %arg8[%35, %c0_i32_23] : memref<8x32xf32, #tpu.memory_space<vmem>> -> memref<1x32xf32, #tpu.memory_space<vmem>>
      %44 = tpu.memref_squeeze %43 : memref<1x32xf32, #tpu.memory_space<vmem>> -> memref<32xf32, #tpu.memory_space<vmem>>
      %45 = tpu.memref_slice %arg9[%35] : memref<8x!tpu.dma_semaphore, #tpu.memory_space<semaphore_mem>> -> memref<1x!tpu.dma_semaphore, #tpu.memory_space<semaphore_mem>>
      %46 = tpu.memref_squeeze %45 : memref<1x!tpu.dma_semaphore, #tpu.memory_space<semaphore_mem>> -> memref<!tpu.dma_semaphore, #tpu.memory_space<semaphore_mem>>
      tpu.enqueue_dma source(%42 : memref<32xf32, #tpu.memory_space<any>>) target(%44 : memref<32xf32, #tpu.memory_space<vmem>>) target_semaphore(%46 : memref<!tpu.dma_semaphore, #tpu.memory_space<semaphore_mem>>)
    }
    %c8_i32_2 = arith.constant 8 : i32
    %c0 = arith.constant 0 : index
    %c0_3 = arith.constant 0 : index
    %4 = vector.load %arg4[%c0, %c0_3] : memref<3x32xf32, #tpu.memory_space<vmem>>, vector<3x32xf32>
    %c0_4 = arith.constant 0 : index
    %c0_5 = arith.constant 0 : index
    %c0_6 = arith.constant 0 : index
    %5 = vector.load %arg5[%c0_4, %c0_5, %c0_6] : memref<1x8x1xi32, #tpu.memory_space<vmem>>, vector<1x8x1xi32>
    %6 = vector.shape_cast %5 : vector<1x8x1xi32> to vector<8x1xi32>
    %c1_i32_7 = arith.constant 1 : i32
    %7 = vector.broadcast %c1_i32_7 : i32 to vector<8x1xi32>
    %8 = arith.cmpi eq, %6, %7 : vector<8x1xi32>
    %9 = vector.extract_strided_slice %4 {offsets = [1, 0], sizes = [1, 32], strides = [1, 1]} : vector<3x32xf32> to vector<1x32xf32>
    %c2_i32 = arith.constant 2 : i32
    %10 = vector.broadcast %c2_i32 : i32 to vector<8x1xi32>
    %11 = arith.cmpi eq, %6, %10 : vector<8x1xi32>
    %12 = vector.extract_strided_slice %4 {offsets = [2, 0], sizes = [1, 32], strides = [1, 1]} : vector<3x32xf32> to vector<1x32xf32>
    %13 = vector.extract_strided_slice %4 {offsets = [0, 0], sizes = [1, 32], strides = [1, 1]} : vector<3x32xf32> to vector<1x32xf32>
    %14 = vector.shape_cast %11 : vector<8x1xi1> to vector<8x1xi1>
    %15 = vector.broadcast %14 : vector<8x1xi1> to vector<8x32xi1>
    %16 = vector.shape_cast %12 : vector<1x32xf32> to vector<1x32xf32>
    %17 = vector.broadcast %16 : vector<1x32xf32> to vector<8x32xf32>
    %18 = vector.shape_cast %13 : vector<1x32xf32> to vector<1x32xf32>
    %19 = vector.broadcast %18 : vector<1x32xf32> to vector<8x32xf32>
    %20 = arith.select %15, %17, %19 : vector<8x32xi1>, vector<8x32xf32>
    %21 = vector.shape_cast %8 : vector<8x1xi1> to vector<8x1xi1>
    %22 = vector.broadcast %21 : vector<8x1xi1> to vector<8x32xi1>
    %23 = vector.shape_cast %9 : vector<1x32xf32> to vector<1x32xf32>
    %24 = vector.broadcast %23 : vector<1x32xf32> to vector<8x32xf32>
    %25 = arith.select %22, %24, %20 : vector<8x32xi1>, vector<8x32xf32>
    %c0_i32_8 = arith.constant 0 : i32
    %c8_i32_9 = arith.constant 8 : i32
    %26 = arith.addi %c0_i32_8, %c8_i32_9 : i32
    %c1_i32_10 = arith.constant 1 : i32
    scf.for %arg10 = %c0_i32_8 to %26 step %c1_i32_10  : i32 {
      %c1_i32_19 = arith.constant 1 : i32
      %34 = arith.muli %arg10, %c1_i32_19 : i32
      %c0_i32_20 = arith.constant 0 : i32
      %35 = arith.addi %c0_i32_20, %34 : i32
      %c0_i32_21 = arith.constant 0 : i32
      %c0_i32_22 = arith.constant 0 : i32
      %36 = tpu.memref_slice %arg3[%c0_i32_21, %c0_i32_22] : memref<32x32xf32, #tpu.memory_space<any>> -> memref<1x32xf32, #tpu.memory_space<any>>
      %37 = tpu.memref_squeeze %36 : memref<1x32xf32, #tpu.memory_space<any>> -> memref<32xf32, #tpu.memory_space<any>>
      %c0_i32_23 = arith.constant 0 : i32
      %38 = tpu.memref_slice %arg8[%35, %c0_i32_23] : memref<8x32xf32, #tpu.memory_space<vmem>> -> memref<1x32xf32, #tpu.memory_space<vmem>>
      %39 = tpu.memref_squeeze %38 : memref<1x32xf32, #tpu.memory_space<vmem>> -> memref<32xf32, #tpu.memory_space<vmem>>
      %40 = tpu.memref_slice %arg9[%35] : memref<8x!tpu.dma_semaphore, #tpu.memory_space<semaphore_mem>> -> memref<1x!tpu.dma_semaphore, #tpu.memory_space<semaphore_mem>>
      %41 = tpu.memref_squeeze %40 : memref<1x!tpu.dma_semaphore, #tpu.memory_space<semaphore_mem>> -> memref<!tpu.dma_semaphore, #tpu.memory_space<semaphore_mem>>
      tpu.wait_dma2 semaphore(%41 : memref<!tpu.dma_semaphore, #tpu.memory_space<semaphore_mem>>) src(%37 : memref<32xf32, #tpu.memory_space<any>>) dst(%39 : memref<32xf32, #tpu.memory_space<vmem>>)
    }
    %c8_i32_11 = arith.constant 8 : i32
    %c0_12 = arith.constant 0 : index
    %c0_13 = arith.constant 0 : index
    %27 = vector.load %arg8[%c0_12, %c0_13] : memref<8x32xf32, #tpu.memory_space<vmem>>, vector<8x32xf32>
    %28 = arith.addf %27, %25 : vector<8x32xf32>
    %c0_14 = arith.constant 0 : index
    %c0_15 = arith.constant 0 : index
    %29 = vector.load %arg6[%c0_14, %c0_15] : memref<8x32xf32, #tpu.memory_space<vmem>>, vector<8x32xf32>
    %30 = arith.addf %28, %29 : vector<8x32xf32>
    %c0_16 = arith.constant 0 : index
    %c0_17 = arith.constant 0 : index
    %c0_18 = arith.constant 0 : index
    %31 = vector.load %arg7[%c0_16, %c0_17, %c0_18] : memref<1x8x32xf32, #tpu.memory_space<vmem>>, vector<1x8x32xf32>
    %32 = vector.shape_cast %31 : vector<1x8x32xf32> to vector<8x32xf32>
    %33 = vector.shape_cast %30 : vector<8x32xf32> to vector<1x8x32xf32>
    tpu.vector_store %arg7[%c0_16, %c0_17, %c0_18], %33 {strides = array<i32>} : memref<1x8x32xf32, #tpu.memory_space<vmem>>, vector<1x8x32xf32>,
    return
  }
  func.func @transform_1(%arg0: i32, %arg1: i32, %arg2: memref<16xi32, #tpu.memory_space<smem>>) -> (i32, i32) {
    %c0_i32 = arith.constant 0 : i32
    %c0_i32_0 = arith.constant 0 : i32
    %c0_i32_1 = arith.constant 0 : i32
    return %c0_i32, %c0_i32_0 : i32, i32
  }
  func.func @transform_2(%arg0: i32, %arg1: i32, %arg2: memref<16xi32, #tpu.memory_space<smem>>) -> (i32, i32, i32) {
    %c0_i32 = arith.constant 0 : i32
    %c0_i32_0 = arith.constant 0 : i32
    return %arg0, %arg1, %c0_i32 : i32, i32, i32
  }
  func.func @transform_3(%arg0: i32, %arg1: i32, %arg2: memref<16xi32, #tpu.memory_space<smem>>) -> (i32, i32) {
    %c0_i32 = arith.constant 0 : i32
    %c0_i32_0 = arith.constant 0 : i32
    return %arg1, %c0_i32 : i32, i32
  }
  func.func @transform_4(%arg0: i32, %arg1: i32, %arg2: memref<16xi32, #tpu.memory_space<smem>>) -> (i32, i32, i32) {
    %c0_i32 = arith.constant 0 : i32
    %c0_i32_0 = arith.constant 0 : i32
    return %arg0, %arg1, %c0_i32 : i32, i32, i32
  }
}

</mosaic_0001>

<llo_original>
// kernel: tpu_custom_call.1
$region0: #{tpu_custom_call.1}
  #allocation0 [shape = 'u32[]', space=smem, size = 0x4, offset = 0x4, fixed_abs, tag = 'smem constant byte address 0x4 - core index']
  #allocation1 [shape = 'u32[72,128]{1,0:T(1,128)}', space=vmem, size = 0x9000, scoped, tag = 'internal scratch']
  #allocation2 [shape = 'f32[8,32]{1,0:T(8,128)}', space=vmem, size = 0x1000, scoped, tag = 'scratch operand']
  #allocation3 [shape = 's32[8]{0}', space=sflag, size = 0x20, scoped, tag = 'scratch operand']
  #allocation4 [shape = 's32[1]{0}', space=sflag, size = 0x4, scoped, tag = 'scoped memory for tpu_custom_call.1']
  #allocation5 [shape = 'u8[512]{0}', space=smem, size = 0x200, scoped, tag = 'prefetched SMEM operand 0']
  #allocation8 [shape = 's32[]', space=sflag, size = 0x4, offset = 0, fixed_abs, tag = 'sflag constant byte address 0x0 - dummy sync flag']
  #allocation9 [shape = 's32[]', space=sflag, size = 0x4, offset = 0, fixed_abs, tag = 'sflag constant byte address 0x0 - dummy sync flag']
  #allocation10 [shape = 'u32[]', space=smem, size = 0x4, offset = 0x44, fixed_abs, tag = 'smem constant byte address 0x44 - assertion arg 0']
  #allocation11 [shape = 'u32[]', space=smem, size = 0x4, offset = 0x48, fixed_abs, tag = 'smem constant byte address 0x48 - assertion arg 1']
  %s0 = inlined_call_operand.vmem [shape: s32[16], index: 0, kind: input, shape index: {}]
  %s1 = inlined_call_operand.hbm [shape: f32[32,32], index: 1, kind: input, shape index: {}]
  %s2 = inlined_call_operand.vmem [shape: f32[3,32], index: 2, kind: input, shape index: {}]
  %s3 = inlined_call_operand.vmem [shape: s32[2,8,1], index: 3, kind: input, shape index: {}]
  %s4 = inlined_call_operand.vmem [shape: f32[8,32], index: 4, kind: input, shape index: {}]
  %s5 = inlined_call_operand.hbm [shape: f32[2,8,32], index: 5, kind: output, shape index: {}]
  %s6 = sld [smem:[#allocation0]]
  $region63: #{tpu_custom_call.1} parent=0
    _
  %s8 = ssub.s32 1, %s6
  %s9 = scalar_select 0, %s8, %s6
  %s11 = sshll.u32 %s0, 4
  %s12 = int_to_ptr.vmem [resolvable:$true] %s11
  %14 = dma.vmem_to_smem %s12, 16, [#allocation5], [#allocation4]
  %16 = dma.done [#allocation4], 16
  %17 = sfence
  $region1: #{tpu_custom_call.1} parent=0
    #allocation6 [shape = 'u8[8192]{0}', space=vmem, size = 0x2000, scoped, tag = 'output window, operand 0']
    #allocation7 [shape = 's32[2]{0}', space=sflag, size = 0x8, scoped, tag = 'scoped memory for tpu_custom_call.1']
    %18 = vsyncpa [#allocation7], 0
    %s19 = scalar_lea.sflag [#allocation7], 1
    %20 = vsyncpa %s19, 0
    loop: start=0, step=1, limit=4
    $region2: #{tpu_custom_call.1} parent=1 // loop_pre_header
      _
    $region3: #{tpu_custom_call.1} parent=1 // loop_header
      %s22 = sphi 0, %s26
      %p23 = scmp.ge.s32.totalorder %s22, 4
      %s29 = sphi 0, %s41
      %s30 = sphi 0, %s37
      %s31 = sphi 0, %s29
      %s32 = sphi 0, %s30
      %s33 = sphi 0, %s31
      %s34 = sphi 0, %s32
      %s42 = sphi 0, %s42
      %s44 = sphi 0, %s42
      %s45 = sphi 0, %s44
      %s59 = sphi 0, %s45
      %s67 = sphi 0, %s69
      %s70 = sphi 0, %s67
      %s71 = sphi 0, %s70
      %s87 = sphi 0, %s71
      %s93 = sphi 0, %s95
      %s96 = sphi 0, %s93
      %s97 = sphi 0, %s96
      %s113 = sphi 0, %s97
      %s121 = sphi 0, %s123
      %s124 = sphi 0, %s121
      %s125 = sphi 0, %s124
      %s141 = sphi 0, %s125
    $region4: #{tpu_custom_call.1} parent=1 // loop_header_branch
      %25 = sbr.rel (%p23) target = $region8
    $region5: #{tpu_custom_call.1} parent=1 // loop_body
      %s27 = ssub.s32 %s22, 1
      %s28 = ssub.s32 %s22, 2
      %s35 = sadd.s32 1, %s30
      %p36 = scmp.ge.s32.totalorder %s35, 1
      %s37 = scalar_select %p36, 0, %s35
      %s38 = sadd.s32 1, %s29
      %s39 = scalar_select %p36, %s38, %s29
      %p40 = scmp.ge.s32.totalorder %s39, 2
      %s41 = scalar_select %p40, 0, %s39
      %s43 = sadd.s32 %s42, 1
      %p46 = scmp.eq.s32.totalorder %s22, 1
      %p47 = scmp.ne.s32.totalorder %s42, %s44
      %p48 = scmp.eq.s32.totalorder %s22, 0
      %p49 = por %p47, %p48
      %p50 = scmp.ne.s32.totalorder %s42, %s44
      %p51 = scmp.eq.s32.totalorder %s27, 1
      %p52 = por %p50, %p51
      %p53 = scmp.ne.s32.totalorder %s44, %s45
      %p54 = scmp.eq.s32.totalorder %s27, 0
      %p55 = por %p53, %p54
      %p56 = scmp.ne.s32.totalorder %s44, %s45
      %p57 = scmp.eq.s32.totalorder %s28, 1
      %p58 = por %p56, %p57
      %p60 = scmp.ne.s32.totalorder %s45, %s59
      %p61 = scmp.eq.s32.totalorder %s28, 0
      %p62 = por %p60, %p61
      %s63 = ssub.s32 %s29, %s41
      %s64 = ssub.s32 %s30, %s37
      %s65 = sor.u32 %s63, %s64
      %p66 = scmp.eq.s32.totalorder %s65, 0
      %s68 = sadd.s32 %s67, 1
      %s69 = scalar_select %p66, %s67, %s68
      %p72 = pneg %p66
      %p73 = scmp.eq.s32.totalorder %s22, 1
      %p74 = por %p72, %p73
      %p75 = scmp.ne.s32.totalorder %s67, %s70
      %p76 = scmp.eq.s32.totalorder %s22, 0
      %p77 = por %p75, %p76
      %p78 = scmp.ne.s32.totalorder %s67, %s70
      %p79 = scmp.eq.s32.totalorder %s27, 1
      %p80 = por %p78, %p79
      %p81 = scmp.ne.s32.totalorder %s70, %s71
      %p82 = scmp.eq.s32.totalorder %s27, 0
      %p83 = por %p81, %p82
      %p84 = scmp.ne.s32.totalorder %s70, %s71
      %p85 = scmp.eq.s32.totalorder %s28, 1
      %p86 = por %p84, %p85
      %p88 = scmp.ne.s32.totalorder %s71, %s87
      %p89 = scmp.eq.s32.totalorder %s28, 0
      %p90 = por %p88, %p89
      %s91 = ssub.s32 %s30, %s37
      %p92 = scmp.eq.s32.totalorder %s91, 0
      %s94 = sadd.s32 %s93, 1
      %s95 = scalar_select %p92, %s93, %s94
      %p98 = pneg %p92
      %p99 = scmp.eq.s32.totalorder %s22, 1
      %p100 = por %p98, %p99
      %p101 = scmp.ne.s32.totalorder %s93, %s96
      %p102 = scmp.eq.s32.totalorder %s22, 0
      %p103 = por %p101, %p102
      %p104 = scmp.ne.s32.totalorder %s93, %s96
      %p105 = scmp.eq.s32.totalorder %s27, 1
      %p106 = por %p104, %p105
      %p107 = scmp.ne.s32.totalorder %s96, %s97
      %p108 = scmp.eq.s32.totalorder %s27, 0
      %p109 = por %p107, %p108
      %p110 = scmp.ne.s32.totalorder %s96, %s97
      %p111 = scmp.eq.s32.totalorder %s28, 1
      %p112 = por %p110, %p111
      %p114 = scmp.ne.s32.totalorder %s97, %s113
      %p115 = scmp.eq.s32.totalorder %s28, 0
      %p116 = por %p114, %p115
      %s117 = ssub.s32 %s29, %s41
      %s118 = ssub.s32 %s30, %s37
      %s119 = sor.u32 %s117, %s118
      %p120 = scmp.eq.s32.totalorder %s119, 0
      %s122 = sadd.s32 %s121, 1
      %s123 = scalar_select %p120, %s121, %s122
      %p126 = pneg %p120
      %p127 = scmp.eq.s32.totalorder %s22, 1
      %p128 = por %p126, %p127
      %p129 = scmp.ne.s32.totalorder %s121, %s124
      %p130 = scmp.eq.s32.totalorder %s22, 0
      %p131 = por %p129, %p130
      %p132 = scmp.ne.s32.totalorder %s121, %s124
      %p133 = scmp.eq.s32.totalorder %s27, 1
      %p134 = por %p132, %p133
      %p135 = scmp.ne.s32.totalorder %s124, %s125
      %p136 = scmp.eq.s32.totalorder %s27, 0
      %p137 = por %p135, %p136
      %p138 = scmp.ne.s32.totalorder %s124, %s125
      %p139 = scmp.eq.s32.totalorder %s28, 1
      %p140 = por %p138, %p139
      %p142 = scmp.ne.s32.totalorder %s125, %s141
      %p143 = scmp.eq.s32.totalorder %s28, 0
      %p144 = por %p142, %p143
      %p145 = scmp.le.s32.totalorder 1, %s22
      %p146 = scmp.lt.s32.totalorder %s22, 3
      %p147 = pnand %p145, %p146
      %p148 = pneg %p147
      // Predicated region
      $region9: #{tpu_custom_call.1} parent=5 // pred_check
        _
      $region10: #{tpu_custom_call.1} parent=5 // pred_check_branch
        %150 = sbr.rel (%p147) target = $region12
      $region11: #{tpu_custom_call.1} parent=5 // pred_region
        %s151 = ssub.s32 %s22, 1
        // Predicated region
        $region13: #{tpu_custom_call.1} parent=11 // pred_check
          %p152 = pneg %p55
        $region14: #{tpu_custom_call.1} parent=11 // pred_check_branch
          %154 = sbr.rel (%p152) target = $region16
        $region15: #{tpu_custom_call.1} parent=11 // pred_region
          _
        $region16: #{tpu_custom_call.1} parent=11 // pred_fallthru
          _
        // Predicated region
        $region17: #{tpu_custom_call.1} parent=11 // pred_check
          %p155 = pneg %p109
        $region18: #{tpu_custom_call.1} parent=11 // pred_check_branch
          %157 = sbr.rel (%p155) target = $region20
        $region19: #{tpu_custom_call.1} parent=11 // pred_region
          %p158 = scmp.lt.s32.totalorder %s32, 0
          %s159 = scalar_select %p158, %s32, 0
          %s160 = smul.addr %s159, 8
          %s161 = scalar_lea.vmem %s4, %s160
        $region20: #{tpu_custom_call.1} parent=11 // pred_fallthru
          _
      $region12: #{tpu_custom_call.1} parent=5 // pred_fallthru
        _
      %p162 = scmp.lt.s32.totalorder %s22, 2
      // Predicated region
      $region21: #{tpu_custom_call.1} parent=5 // pred_check
        %p163 = pneg %p162
      $region22: #{tpu_custom_call.1} parent=5 // pred_check_branch
        %165 = sbr.rel (%p163) target = $region24
      $region23: #{tpu_custom_call.1} parent=5 // pred_region
        // Predicated region
        $region25: #{tpu_custom_call.1} parent=23 // pred_check
          %p166 = pneg %p77
        $region26: #{tpu_custom_call.1} parent=23 // pred_check_branch
          %168 = sbr.rel (%p166) target = $region28
        $region27: #{tpu_custom_call.1} parent=23 // pred_region
          %p169 = scmp.lt.s32.totalorder %s29, 1
          %s170 = scalar_select %p169, %s29, 1
          %p171 = scmp.lt.s32.totalorder %s30, 0
          %s172 = scalar_select %p171, %s30, 0
          %s173 = sadd.s32 %s172, %s170
          %s174 = smul.addr %s173, 8
          %s175 = scalar_lea.vmem %s3, %s174
        $region28: #{tpu_custom_call.1} parent=23 // pred_fallthru
          _
      $region24: #{tpu_custom_call.1} parent=5 // pred_fallthru
        _
      %p176 = scmp.le.s32.totalorder 1, %s22
      %p177 = scmp.lt.s32.totalorder %s22, 3
      %p178 = pnand %p176, %p177
      %p179 = pneg %p178
      // Predicated region
      $region29: #{tpu_custom_call.1} parent=5 // pred_check
        _
      $region30: #{tpu_custom_call.1} parent=5 // pred_check_branch
        %181 = sbr.rel (%p178) target = $region32
      $region31: #{tpu_custom_call.1} parent=5 // pred_region
        %s182 = ssub.s32 %s22, 1
        %p183 = pneg %p55
        %p184 = pneg %p52
        %p185 = scmp.lt.s32.totalorder %s31, 1
        %s186 = scalar_select %p185, %s31, 1
        %p187 = scmp.lt.s32.totalorder %s32, 0
        %s188 = scalar_select %p187, %s32, 0
        %s189 = sadd.s32 %s188, %s186
        %s190 = smul.addr %s189, 8
        %s191 = scalar_lea.vmem %s3, %s190
        %p192 = pneg %p83
        %p193 = pneg %p80
        %p194 = scmp.lt.s32.totalorder %s32, 0
        %s195 = scalar_select %p194, %s32, 0
        %s196 = smul.addr %s195, 8
        %s197 = scalar_lea.vmem %s4, %s196
        %p198 = pneg %p109
        %p199 = pneg %p106
        %p200 = pneg %p137
        %p201 = pneg %p134
        %s202 = sand.u32 %s124, 1
        %s203 = scalar_lea.sflag [#allocation7], %s202
        %s204 = sand.u32 %s124, 1
        %s205 = smul.addr %s204, 8
        %s206 = scalar_lea.vmem [#allocation6], %s205
        %p207 = scmp.lt.s32.totalorder %s31, 1
        %s208 = scalar_select %p207, %s31, 1
        %p209 = scmp.lt.s32.totalorder %s32, 0
        %s210 = scalar_select %p209, %s32, 0
        %s211 = sadd.s32 %s210, %s208
        %s212 = smul.addr %s211, 8
        %s213 = scalar_lea.vmem %s3, %s212
        %p214 = scmp.lt.s32.totalorder %s32, 0
        %s215 = scalar_select %p214, %s32, 0
        %s216 = smul.addr %s215, 8
        %s217 = scalar_lea.vmem %s4, %s216
        %s218 = smul.u32 %s31, 8
        %s219 = smul.u32 %s32, 8
        %s220 = sadd.s32 %s218, %s219
        loop: start=0, step=1, limit=8
        $region33: #{tpu_custom_call.1} parent=31 // loop_pre_header
          _
        $region34: #{tpu_custom_call.1} parent=31 // loop_header
          %s222 = sphi 0, %s226
          %p223 = scmp.ge.s32.totalorder %s222, 8
        $region35: #{tpu_custom_call.1} parent=31 // loop_header_branch
          %225 = sbr.rel (%p223) target = $region39
        $region36: #{tpu_custom_call.1} parent=31 // loop_body
          %s227 = sadd.s32 %s220, %s222
          %s228 = sld [smem:[#allocation5 + %s227]]
          %p229 = scmp.gt.s32.totalorder %s228, 0
          %s230 = scalar_select %p229, %s228, 0
          %p231 = scmp.lt.s32.totalorder %s230, 31
          %s232 = scalar_select %p231, %s230, 31
          %s233 = scalar_lea.hbm %s1, %s232
          %s234 = scalar_lea.vmem [#allocation2], %s222
          %s235 = scalar_lea.sflag [#allocation3], %s222
          // Predicated region
          $region40: #{tpu_custom_call.1} parent=36 // pred_check
            _
          $region41: #{tpu_custom_call.1} parent=36 // pred_check_branch
            %237 = sbr.rel target = $region43
          $region42: #{tpu_custom_call.1} parent=36 // pred_region
            %238 = sst [smem:[#allocation10]] [#allocation9]
            %239 = sst [smem:[#allocation11]] [#allocation8]
          $region43: #{tpu_custom_call.1} parent=36 // pred_fallthru
            _
          %241 = shalt.err (0)
          %s243 = sshll.u32 %s233, 4
          %s244 = int_to_ptr.hbm [resolvable:$true] %s243
          %s245 = sshll.u32 %s234, 4
          %s246 = int_to_ptr.vmem [resolvable:$true] %s245
          %248 = dma.hbm_to_vmem [thread:$0]  %s244, 16, %s246, %s235
        $region37: #{tpu_custom_call.1} parent=31 // loop_footer
          %s226 = sadd.s32 1, %s222
        $region38: #{tpu_custom_call.1} parent=31 // loop_footer_branch
          %221 = sbr.rel target = $region34
        $region39: #{tpu_custom_call.1} parent=31 // loop_exit
          _
        %v249 = vld [vmem:[%s2] sm:$0x7]
        %v250 = vld [vmem:[%s213] sm:$0xff]
        %vm251 = vcmp.eq.s32.totalorder %v250, 1
        %vm252 = vcmp.eq.s32.totalorder %v250, 2
        %v253 = vsel %vm252, 1, 0
        %254 = vset.pattern.permute.xlu0 0
        %255 = vperm.xlu0 %254, %v253
        %v256 = vpop.permute.xlu0 %255
        %vm257 = vcmp.eq.s32.totalorder %v256, 1
        %v258 = vperm.slane %v249, 2
        %v259 = vperm.slane %v249, 0
        %v260 = vsel %vm257, %v258, %v259
        %v261 = vsel %vm251, 1, 0
        %262 = vset.pattern.permute.xlu0 0
        %263 = vperm.xlu0 %262, %v261
        %v264 = vpop.permute.xlu0 %263
        %vm265 = vcmp.eq.s32.totalorder %v264, 1
        %v266 = vperm.slane %v249, 1
        %v267 = vsel %vm265, %v266, %v260
        loop: start=0, step=1, limit=8
        $region44: #{tpu_custom_call.1} parent=31 // loop_pre_header
          _
        $region45: #{tpu_custom_call.1} parent=31 // loop_header
          %s269 = sphi 0, %s273
          %p270 = scmp.ge.s32.totalorder %s269, 8
        $region46: #{tpu_custom_call.1} parent=31 // loop_header_branch
          %272 = sbr.rel (%p270) target = $region50
        $region47: #{tpu_custom_call.1} parent=31 // loop_body
          %s274 = scalar_lea.sflag [#allocation3], %s269
          %276 = dma.done %s274, 16
        $region48: #{tpu_custom_call.1} parent=31 // loop_footer
          %s273 = sadd.s32 1, %s269
        $region49: #{tpu_custom_call.1} parent=31 // loop_footer_branch
          %268 = sbr.rel target = $region45
        $region50: #{tpu_custom_call.1} parent=31 // loop_exit
          _
        %v277 = vld [vmem:[#allocation2] sm:$0xff]
        %v278 = vadd.f32 %v277, %v267
        %v279 = vld [vmem:[%s217] sm:$0xff]
        %v280 = vadd.f32 %v278, %v279
        %vm281 = vcmask 261120
        %282 = vst.msk [vmem:[%s206] sm:$0xff] %vm281, %v280
        %s283 = sand.u32 %s124, 1
        %s284 = scalar_lea.sflag [#allocation7], %s283
        %s285 = sand.u32 %s124, 1
        %s286 = smul.addr %s285, 8
        %s287 = scalar_lea.vmem [#allocation6], %s286
        // Predicated region
        $region51: #{tpu_custom_call.1} parent=31 // pred_check
          %p288 = pneg %p134
        $region52: #{tpu_custom_call.1} parent=31 // pred_check_branch
          %290 = sbr.rel (%p288) target = $region54
        $region53: #{tpu_custom_call.1} parent=31 // pred_region
          %292 = vsyncadd %s284, 0
          %s293 = sadd.s32 %s32, %s31
          %s294 = smul.addr %s293, 8
          %s295 = scalar_lea.hbm %s5, %s294
          %s297 = sshll.u32 %s287, 4
          %s298 = int_to_ptr.vmem [resolvable:$true] %s297
          %s299 = sshll.u32 %s295, 4
          %s300 = int_to_ptr.hbm [resolvable:$true] %s299
          %302 = dma.vmem_to_hbm [thread:$0]  %s298, 128, %s300, %s284
        $region54: #{tpu_custom_call.1} parent=31 // pred_fallthru
          _
      $region32: #{tpu_custom_call.1} parent=5 // pred_fallthru
        _
      %p303 = scmp.le.s32.totalorder 2, %s22
      // Predicated region
      $region55: #{tpu_custom_call.1} parent=5 // pred_check
        %p304 = pneg %p303
      $region56: #{tpu_custom_call.1} parent=5 // pred_check_branch
        %306 = sbr.rel (%p304) target = $region58
      $region57: #{tpu_custom_call.1} parent=5 // pred_region
        %s307 = ssub.s32 %s22, 2
        // Predicated region
        $region59: #{tpu_custom_call.1} parent=57 // pred_check
          %p308 = pneg %p140
        $region60: #{tpu_custom_call.1} parent=57 // pred_check_branch
          %310 = sbr.rel (%p308) target = $region62
        $region61: #{tpu_custom_call.1} parent=57 // pred_region
          %s311 = sand.u32 %s125, 1
          %s312 = scalar_lea.sflag [#allocation7], %s311
          %s313 = sand.u32 %s125, 1
          %s314 = smul.addr %s313, 8
          %s315 = scalar_lea.vmem [#allocation6], %s314
          %317 = dma.done %s312, 128
        $region62: #{tpu_custom_call.1} parent=57 // pred_fallthru
          _
      $region58: #{tpu_custom_call.1} parent=5 // pred_fallthru
        _
    $region6: #{tpu_custom_call.1} parent=1 // loop_footer
      %s26 = sadd.s32 1, %s22
    $region7: #{tpu_custom_call.1} parent=1 // loop_footer_branch
      %21 = sbr.rel target = $region3
    $region8: #{tpu_custom_call.1} parent=1 // loop_exit
      _
    %318 = vsyncpa [#allocation7], 1
    %s319 = scalar_lea.sflag [#allocation7], 1
    %320 = vsyncpa %s319, 1
  %321 = vsyncmov [#allocation3]
  %s322 = vpop.sfrf %321
  %p323 = scmp.eq.s32.totalorder %s322, 0
  %p324 = pneg %p323
  %326 = shalt.err (%p324)
  %s327 = scalar_lea.sflag [#allocation3], 1
  %328 = vsyncmov %s327
  %s329 = vpop.sfrf %328
  %p330 = scmp.eq.s32.totalorder %s329, 0
  %p331 = pneg %p330
  %333 = shalt.err (%p331)
  %s334 = scalar_lea.sflag [#allocation3], 2
  %335 = vsyncmov %s334
  %s336 = vpop.sfrf %335
  %p337 = scmp.eq.s32.totalorder %s336, 0
  %p338 = pneg %p337
  %340 = shalt.err (%p338)
  %s341 = scalar_lea.sflag [#allocation3], 3
  %342 = vsyncmov %s341
  %s343 = vpop.sfrf %342
  %p344 = scmp.eq.s32.totalorder %s343, 0
  %p345 = pneg %p344
  %347 = shalt.err (%p345)
  %s348 = scalar_lea.sflag [#allocation3], 4
  %349 = vsyncmov %s348
  %s350 = vpop.sfrf %349
  %p351 = scmp.eq.s32.totalorder %s350, 0
  %p352 = pneg %p351
  %354 = shalt.err (%p352)
  %s355 = scalar_lea.sflag [#allocation3], 5
  %356 = vsyncmov %s355
  %s357 = vpop.sfrf %356
  %p358 = scmp.eq.s32.totalorder %s357, 0
  %p359 = pneg %p358
  %361 = shalt.err (%p359)
  %s362 = scalar_lea.sflag [#allocation3], 6
  %363 = vsyncmov %s362
  %s364 = vpop.sfrf %363
  %p365 = scmp.eq.s32.totalorder %s364, 0
  %p366 = pneg %p365
  %368 = shalt.err (%p366)
  %s369 = scalar_lea.sflag [#allocation3], 7
  %370 = vsyncmov %s369
  %s371 = vpop.sfrf %370
  %p372 = scmp.eq.s32.totalorder %s371, 0
  %p373 = pneg %p372
  %375 = shalt.err (%p373)

</llo_original>
